<compile_context>
chip_gen: v6e
topology: v6e:2x2x1
jax: 0.10.0
libtpu: 0.0.40
codegen_flags: <defaults>
</compile_context>

<pallas_src>
import jax
import jax.numpy as jnp
from jax.experimental import pallas as pl
from jax.experimental.pallas import tpu as pltpu

LANE = 128       # lane width (last-dim alignment target)
SUBLANE = 8      # f32 sublane height
MIN_SPLIT_ROWS = 64   # only force a 2-step grid if each half has >= this many rows


def _round_up(n, m):
    return ((n + m - 1) // m) * m


def _relu1_kernel(x_ref, w1_ref, b1_ref, w2x_ref, w2h_ref, b2_ref, o_ref):
    x = x_ref[...]                                   # (TB, in_size), unpadded lanes

    # layer1: Linear + (Dropout == identity at eval) + ReLU; f32 accumulation on MXU.
    h = jnp.dot(x, w1_ref[...], preferred_element_type=jnp.float32)
    h = jnp.maximum(h + b1_ref[...].astype(jnp.float32), 0.0)

    # output Linear over cat([x, h], dim=1), de-fused into two dots:
    #   cat([x, h]) @ [W2x; W2h] == x @ W2x + h @ W2h
    # dot(x, W2x) is independent of h, so it overlaps with the bias+ReLU above.
    out = jnp.dot(x, w2x_ref[...], preferred_element_type=jnp.float32)
    out = out + jnp.dot(h.astype(w2h_ref.dtype), w2h_ref[...],
                        preferred_element_type=jnp.float32)
    out = out + b2_ref[...].astype(jnp.float32)

    o_ref[...] = out.astype(o_ref.dtype)             # (TB, out_size) store


def prepare_relu1_params(w1, b1, w2, b2, dtype=jnp.float32):
    """One-time weight layout: transpose, split the cat-weight, pad hidden to 128.

    w1: [hidden, in_size]; b1: [hidden];
    w2: [out_size, in_size + hidden]; b2: [out_size]   (PyTorch Linear conventions).
    """
    hidden, in_size = w1.shape
    out_size = w2.shape[0]
    hid_pad = _round_up(hidden, LANE)

    # W1^T with hidden (output) lanes zero-padded to a full 128-lane slab so the
    # intermediate h is lane-dense; padded lanes are ReLU(0 + 0) = 0.
    w1p = jnp.zeros((in_size, hid_pad), dtype).at[:, :hidden].set(w1.T.astype(dtype))
    b1p = jnp.zeros((1, hid_pad), dtype).at[0, :hidden].set(b1.astype(dtype))

    # Split output weight: x-part and h-part (h-part rows padded with zeros so the
    # zero-padded h lanes contribute nothing).
    w2x = w2[:, :in_size].T.astype(dtype)                          # (in_size, out_size)
    w2h = jnp.zeros((hid_pad, out_size), dtype).at[:hidden, :].set(
        w2[:, in_size:].T.astype(dtype))                           # (hid_pad, out_size)
    b2p = b2.astype(dtype).reshape(1, out_size)

    return {
        "w1": w1p, "b1": b1p, "w2x": w2x, "w2h": w2h, "b2": b2p,
        "in_size": in_size, "hidden": hidden, "hid_pad": hid_pad,
        "out_size": out_size,
    }


def relu_1_forward(x, params, *, batch_tile=512):
    """x: [B, in_size]; params from prepare_relu1_params. Returns [B, out_size]."""
    B, in_size = x.shape
    assert in_size == params["in_size"]
    hid_pad = params["hid_pad"]
    out_size = params["out_size"]

    # Batch tile: as large as requested, but never force padding the whole batch up
    # to a tile. If one tile would cover everything and the batch is large enough,
    # split into >= 2 steps so the parallel grid axis can use both v7x TensorCores.
    TB = min(batch_tile, _round_up(B, SUBLANE))
    if pl.cdiv(B, TB) < 2 and B >= 2 * MIN_SPLIT_ROWS:
        TB = _round_up(pl.cdiv(B, 2), SUBLANE)
    grid = (pl.cdiv(B, TB),)   # partial tail block OK: rows are independent

    out = pl.pallas_call(
        _relu1_kernel,
        out_shape=jax.ShapeDtypeStruct((B, out_size), x.dtype),
        grid=grid,
        in_specs=[
            pl.BlockSpec((TB, in_size), lambda i: (i, 0)),        # x tile (unpadded)
            pl.BlockSpec((in_size, hid_pad), lambda i: (0, 0)),   # W1^T (resident)
            pl.BlockSpec((1, hid_pad), lambda i: (0, 0)),         # b1
            pl.BlockSpec((in_size, out_size), lambda i: (0, 0)),  # W2 x-part
            pl.BlockSpec((hid_pad, out_size), lambda i: (0, 0)),  # W2 h-part
            pl.BlockSpec((1, out_size), lambda i: (0, 0)),        # b2
        ],
        out_specs=pl.BlockSpec((TB, out_size), lambda i: (i, 0)), # direct, no pad/slice
        compiler_params=pltpu.CompilerParams(
            dimension_semantics=("parallel",)),
    )(x, params["w1"], params["b1"], params["w2x"], params["w2h"], params["b2"])

    return out


def _reference(x, w1, b1, w2, b2):
    h = jnp.maximum(x @ w1.T + b1, 0.0)
    return jnp.concatenate([x, h], axis=1) @ w2.T + b2


if __name__ == "__main__":
    # Small shapes consistent with the module's forward.
    batch, in_size, hidden_size, out_size = 8, 32, 64, 16
    dropout_rate = 0.1  # unused at inference (Dropout == identity in eval)

    key = jax.random.PRNGKey(0)
    kx, k1w, k1b, k2w, k2b, kx2, kx3 = jax.random.split(key, 7)

    x = jax.random.normal(kx, (batch, in_size), dtype=jnp.float32)

    # Deterministic parameter init (PyTorch-style uniform bounds).
    bound1 = 1.0 / (in_size ** 0.5)
    w1 = jax.random.uniform(k1w, (hidden_size, in_size), minval=-bound1, maxval=bound1)
    b1 = jax.random.uniform(k1b, (hidden_size,), minval=-bound1, maxval=bound1)

    bound2 = 1.0 / ((in_size + hidden_size) ** 0.5)
    w2 = jax.random.uniform(k2w, (out_size, in_size + hidden_size),
                            minval=-bound2, maxval=bound2)
    b2 = jax.random.uniform(k2b, (out_size,), minval=-bound2, maxval=bound2)

    # One-time weight layout prep (hoisted out of the forward path).
    params = prepare_relu1_params(w1, b1, w2, b2)

    # --- Check 1: tiny batch, single grid step (latency path). ---
    out = relu_1_forward(x, params)
    jax.block_until_ready(out)
    ref = _reference(x, w1, b1, w2, b2)
    assert out.shape == (batch, out_size)
    assert jnp.allclose(out, ref, atol=1e-5, rtol=1e-5)

    # --- Check 2: medium batch forcing a 2-step parallel grid (megacore path). ---
    x2 = jax.random.normal(kx2, (256, in_size), dtype=jnp.float32)
    out2 = relu_1_forward(x2, params)            # TB -> 128, grid = (2,)
    jax.block_until_ready(out2)
    assert jnp.allclose(out2, _reference(x2, w1, b1, w2, b2), atol=1e-5, rtol=1e-5)

    # --- Check 3: non-divisible batch, partial tail block (no batch padding). ---
    x3 = jax.random.normal(kx3, (300, in_size), dtype=jnp.float32)
    out3 = relu_1_forward(x3, params, batch_tile=128)   # grid = (3,), tail is partial
    jax.block_until_ready(out3)
    assert out3.shape == (300, out_size)
    assert jnp.allclose(out3, _reference(x3, w1, b1, w2, b2), atol=1e-5, rtol=1e-5)

    print("KERNEL_OK")
</pallas_src>

<mosaic_0001>
module attributes {stable_mosaic.version = 11 : i64} {
  func.func @_relu1_kernel(%arg0: i32, %arg1: memref<8x32xf32, #tpu.memory_space<vmem>>, %arg2: memref<32x128xf32, #tpu.memory_space<vmem>>, %arg3: memref<1x128xf32, #tpu.memory_space<vmem>>, %arg4: memref<32x16xf32, #tpu.memory_space<vmem>>, %arg5: memref<128x16xf32, #tpu.memory_space<vmem>>, %arg6: memref<1x16xf32, #tpu.memory_space<vmem>>, %arg7: memref<8x16xf32, #tpu.memory_space<vmem>>) attributes {dimension_semantics = [#tpu.dimension_semantics<parallel>], iteration_bounds = array<i64: 1>, scalar_prefetch = 0 : i64, scratch_operands = 0 : i64, tpu.core_type = #tpu.core_type<tc>, window_params = [{transform_indices = @transform_0, window_bounds = array<i64: 8, 32>}, {pipeline_mode = #tpu.pipeline_mode<synchronous>, transform_indices = @transform_1, window_bounds = array<i64: 32, 128>}, {pipeline_mode = #tpu.pipeline_mode<synchronous>, transform_indices = @transform_2, window_bounds = array<i64: 1, 128>}, {pipeline_mode = #tpu.pipeline_mode<synchronous>, transform_indices = @transform_3, window_bounds = array<i64: 32, 16>}, {pipeline_mode = #tpu.pipeline_mode<synchronous>, transform_indices = @transform_4, window_bounds = array<i64: 128, 16>}, {pipeline_mode = #tpu.pipeline_mode<synchronous>, transform_indices = @transform_5, window_bounds = array<i64: 1, 16>}, {transform_indices = @transform_6, window_bounds = array<i64: 8, 16>}]} {
    %c0 = arith.constant 0 : index
    %c0_0 = arith.constant 0 : index
    %0 = vector.load %arg1[%c0, %c0_0] : memref<8x32xf32, #tpu.memory_space<vmem>>, vector<8x32xf32>
    %c0_1 = arith.constant 0 : index
    %c0_2 = arith.constant 0 : index
    %1 = vector.load %arg2[%c0_1, %c0_2] : memref<32x128xf32, #tpu.memory_space<vmem>>, vector<32x128xf32>
    %cst = arith.constant dense<0.000000e+00> : vector<8x128xf32>
    %2 = tpu.matmul %0, %1, %cst {dimension_numbers = #tpu.dot_dimension_numbers<[1], [0], [0], [1], [0, 0, 1, 1], [], []>} : vector<8x32xf32>, vector<32x128xf32>, vector<8x128xf32> -> vector<8x128xf32>
    %c0_3 = arith.constant 0 : index
    %c0_4 = arith.constant 0 : index
    %3 = vector.load %arg3[%c0_3, %c0_4] : memref<1x128xf32, #tpu.memory_space<vmem>>, vector<1x128xf32>
    %4 = vector.broadcast %3 : vector<1x128xf32> to vector<8x128xf32>
    %5 = arith.addf %2, %4 : vector<8x128xf32>
    %cst_5 = arith.constant 0.000000e+00 : f32
    %6 = vector.broadcast %cst_5 : f32 to vector<8x128xf32>
    %7 = arith.maximumf %5, %6 : vector<8x128xf32>
    %c0_6 = arith.constant 0 : index
    %c0_7 = arith.constant 0 : index
    %8 = vector.load %arg4[%c0_6, %c0_7] : memref<32x16xf32, #tpu.memory_space<vmem>>, vector<32x16xf32>
    %cst_8 = arith.constant dense<0.000000e+00> : vector<8x16xf32>
    %9 = tpu.matmul %0, %8, %cst_8 {dimension_numbers = #tpu.dot_dimension_numbers<[1], [0], [0], [1], [0, 0, 1, 1], [], []>} : vector<8x32xf32>, vector<32x16xf32>, vector<8x16xf32> -> vector<8x16xf32>
    %c0_9 = arith.constant 0 : index
    %c0_10 = arith.constant 0 : index
    %10 = vector.load %arg5[%c0_9, %c0_10] : memref<128x16xf32, #tpu.memory_space<vmem>>, vector<128x16xf32>
    %cst_11 = arith.constant dense<0.000000e+00> : vector<8x16xf32>
    %11 = tpu.matmul %7, %10, %cst_11 {dimension_numbers = #tpu.dot_dimension_numbers<[1], [0], [0], [1], [0, 0, 1, 1], [], []>} : vector<8x128xf32>, vector<128x16xf32>, vector<8x16xf32> -> vector<8x16xf32>
    %12 = arith.addf %9, %11 : vector<8x16xf32>
    %c0_12 = arith.constant 0 : index
    %c0_13 = arith.constant 0 : index
    %13 = vector.load %arg6[%c0_12, %c0_13] : memref<1x16xf32, #tpu.memory_space<vmem>>, vector<1x16xf32>
    %14 = vector.broadcast %13 : vector<1x16xf32> to vector<8x16xf32>
    %15 = arith.addf %12, %14 : vector<8x16xf32>
    %c0_14 = arith.constant 0 : index
    %c0_15 = arith.constant 0 : index
    %16 = vector.load %arg7[%c0_14, %c0_15] : memref<8x16xf32, #tpu.memory_space<vmem>>, vector<8x16xf32>
    tpu.vector_store %arg7[%c0_14, %c0_15], %15 {strides = array<i32>} : memref<8x16xf32, #tpu.memory_space<vmem>>, vector<8x16xf32>,
    return
  }
  func.func @transform_0(%arg0: i32) -> (i32, i32) {
    %c0_i32 = arith.constant 0 : i32
    %c0_i32_0 = arith.constant 0 : i32
    return %arg0, %c0_i32 : i32, i32
  }
  func.func @transform_1(%arg0: i32) -> (i32, i32) {
    %c0_i32 = arith.constant 0 : i32
    %c0_i32_0 = arith.constant 0 : i32
    %c0_i32_1 = arith.constant 0 : i32
    return %c0_i32, %c0_i32_0 : i32, i32
  }
  func.func @transform_2(%arg0: i32) -> (i32, i32) {
    %c0_i32 = arith.constant 0 : i32
    %c0_i32_0 = arith.constant 0 : i32
    %c0_i32_1 = arith.constant 0 : i32
    return %c0_i32, %c0_i32_0 : i32, i32
  }
  func.func @transform_3(%arg0: i32) -> (i32, i32) {
    %c0_i32 = arith.constant 0 : i32
    %c0_i32_0 = arith.constant 0 : i32
    %c0_i32_1 = arith.constant 0 : i32
    return %c0_i32, %c0_i32_0 : i32, i32
  }
  func.func @transform_4(%arg0: i32) -> (i32, i32) {
    %c0_i32 = arith.constant 0 : i32
    %c0_i32_0 = arith.constant 0 : i32
    %c0_i32_1 = arith.constant 0 : i32
    return %c0_i32, %c0_i32_0 : i32, i32
  }
  func.func @transform_5(%arg0: i32) -> (i32, i32) {
    %c0_i32 = arith.constant 0 : i32
    %c0_i32_0 = arith.constant 0 : i32
    %c0_i32_1 = arith.constant 0 : i32
    return %c0_i32, %c0_i32_0 : i32, i32
  }
  func.func @transform_6(%arg0: i32) -> (i32, i32) {
    %c0_i32 = arith.constant 0 : i32
    %c0_i32_0 = arith.constant 0 : i32
    return %arg0, %c0_i32 : i32, i32
  }
}

</mosaic_0001>

<llo_original>
// kernel: tpu_custom_call.1
$region0: #{tpu_custom_call.1}
  #allocation0 [shape = 'u32[]', space=smem, size = 0x4, offset = 0x4, fixed_abs, tag = 'smem constant byte address 0x4 - core index']
  #allocation1 [shape = 'u32[144,128]{1,0:T(1,128)}', space=vmem, size = 0x12000, scoped, tag = 'internal scratch']
  %s0 = inlined_call_operand.vmem [shape: f32[8,32], index: 0, kind: input, shape index: {}]
  %s1 = inlined_call_operand.vmem [shape: f32[32,128], index: 1, kind: input, shape index: {}]
  %s2 = inlined_call_operand.vmem [shape: f32[1,128], index: 2, kind: input, shape index: {}]
  %s3 = inlined_call_operand.vmem [shape: f32[32,16], index: 3, kind: input, shape index: {}]
  %s4 = inlined_call_operand.vmem [shape: f32[128,16], index: 4, kind: input, shape index: {}]
  %s5 = inlined_call_operand.vmem [shape: f32[1,16], index: 5, kind: input, shape index: {}]
  %s6 = inlined_call_operand.hbm [shape: f32[8,16], index: 6, kind: output, shape index: {}]
  %s7 = sld [smem:[#allocation0]]
  $region34: #{tpu_custom_call.1} parent=0
    _
  %s9 = ssub.s32 1, %s7
  %s10 = scalar_select 0, %s9, %s7
  $region1: #{tpu_custom_call.1} parent=0
    #allocation2 [shape = 'u8[4096]{0}', space=vmem, size = 0x1000, scoped, tag = 'output window, operand 0, single buffered']
    #allocation3 [shape = 's32[1]{0}', space=sflag, size = 0x4, scoped, tag = 'scoped memory for tpu_custom_call.1']
    %11 = vsyncpa [#allocation3], 0
    // Predicated region
    $region2: #{tpu_custom_call.1} parent=1 // pred_check
      _
    $region3: #{tpu_custom_call.1} parent=1 // pred_check_branch
      %13 = sbr.rel (0) target = $region5
    $region4: #{tpu_custom_call.1} parent=1 // pred_region
      _
    $region5: #{tpu_custom_call.1} parent=1 // pred_fallthru
      _
    // Predicated region
    $region6: #{tpu_custom_call.1} parent=1 // pred_check
      _
    $region7: #{tpu_custom_call.1} parent=1 // pred_check_branch
      %15 = sbr.rel (0) target = $region9
    $region8: #{tpu_custom_call.1} parent=1 // pred_region
      _
    $region9: #{tpu_custom_call.1} parent=1 // pred_fallthru
      _
    // Predicated region
    $region10: #{tpu_custom_call.1} parent=1 // pred_check
      _
    $region11: #{tpu_custom_call.1} parent=1 // pred_check_branch
      %17 = sbr.rel (0) target = $region13
    $region12: #{tpu_custom_call.1} parent=1 // pred_region
      _
    $region13: #{tpu_custom_call.1} parent=1 // pred_fallthru
      _
    // Predicated region
    $region14: #{tpu_custom_call.1} parent=1 // pred_check
      _
    $region15: #{tpu_custom_call.1} parent=1 // pred_check_branch
      %19 = sbr.rel (0) target = $region17
    $region16: #{tpu_custom_call.1} parent=1 // pred_region
      _
    $region17: #{tpu_custom_call.1} parent=1 // pred_fallthru
      _
    // Predicated region
    $region18: #{tpu_custom_call.1} parent=1 // pred_check
      _
    $region19: #{tpu_custom_call.1} parent=1 // pred_check_branch
      %21 = sbr.rel (0) target = $region21
    $region20: #{tpu_custom_call.1} parent=1 // pred_region
      _
    $region21: #{tpu_custom_call.1} parent=1 // pred_fallthru
      _
    // Predicated region
    $region22: #{tpu_custom_call.1} parent=1 // pred_check
      _
    $region23: #{tpu_custom_call.1} parent=1 // pred_check_branch
      %23 = sbr.rel (0) target = $region25
    $region24: #{tpu_custom_call.1} parent=1 // pred_region
      _
    $region25: #{tpu_custom_call.1} parent=1 // pred_fallthru
      _
    %v24 = vld [vmem:[%s0] sm:$0xff]
    %v25 = vld [vmem:[%s1] sm:$0xff]
    %v26 = vld [vmem:[%s1 + $0x8] sm:$0xff]
    %v27 = vld [vmem:[%s1 + $0x10] sm:$0xff]
    %v28 = vld [vmem:[%s1 + $0x18] sm:$0xff]
    %v29 = vld [vmem:[%s2] sm:$0x1]
    %v31 = vlaneseq
    %v32 = vshrl.u32 %v31, 7
    %v33 = vsub.s32 0, %v32
    %v34 = vrot.slane %v29, %v33
    %vm36 = vcmask 261120
    %v38 = vsel %vm36, %v24, 0
    %40 = vmatprep.subr.mxu0 0.0
    %41 = vmatpush1.msra.mxu0 0.0
    %42 = vmatprep.subr.mxu0 0.0
    %43 = vmatpush1.msra.mxu0 0.0
    %44 = vmatprep.subr.mxu0 0.0
    %45 = vmatpush1.msra.mxu0 0.0
    %46 = vmatprep.subr.mxu0 0.0
    %47 = vmatpush1.msra.mxu0 0.0
    %48 = vmatprep.subr.mxu0 0.0
    %49 = vmatpush1.msra.mxu0 0.0
    %50 = vmatprep.subr.mxu0 0.0
    %51 = vmatpush1.msra.mxu0 0.0
    %52 = vmatprep.subr.mxu0 0.0
    %53 = vmatpush1.msra.mxu0 0.0
    %54 = vmatprep.subr.mxu0 0.0
    %55 = vmatpush1.msra.mxu0 0.0
    %56 = vmatprep.subr.mxu0 0.0
    %57 = vmatpush1.msra.mxu0 0.0
    %58 = vmatprep.subr.mxu0 0.0
    %59 = vmatpush1.msra.mxu0 0.0
    %60 = vmatprep.subr.mxu0 0.0
    %61 = vmatpush1.msra.mxu0 0.0
    %62 = vmatprep.subr.mxu0 0.0
    %63 = vmatpush1.msra.mxu0 0.0
    %64 = vmatprep.subr.mxu0 0.0
    %65 = vmatpush1.msra.mxu0 %v28
    %66 = vmatprep.subr.mxu0 0.0
    %67 = vmatpush1.msra.mxu0 %v27
    %68 = vmatprep.subr.mxu0 0.0
    %69 = vmatpush1.msra.mxu0 %v26
    %70 = vmatprep.subr.mxu0 0.0
    %71 = vmatpush1.msra.mxu0 %v25
    %72 = vmatprep.subr.mxu0 0.0
    %73 = vmatpush2.msra.mxu0 0.0
    %74 = vmatprep.subr.mxu0 0.0
    %75 = vmatpush2.msra.mxu0 0.0
    %76 = vmatprep.subr.mxu0 0.0
    %77 = vmatpush2.msra.mxu0 0.0
    %78 = vmatprep.subr.mxu0 0.0
    %79 = vmatpush2.msra.mxu0 0.0
    %80 = vmatprep.subr.mxu0 0.0
    %81 = vmatpush2.msra.mxu0 0.0
    %82 = vmatprep.subr.mxu0 0.0
    %83 = vmatpush2.msra.mxu0 0.0
    %84 = vmatprep.subr.mxu0 0.0
    %85 = vmatpush2.msra.mxu0 0.0
    %86 = vmatprep.subr.mxu0 0.0
    %87 = vmatpush2.msra.mxu0 0.0
    %88 = vmatprep.subr.mxu0 0.0
    %89 = vmatpush2.msra.mxu0 0.0
    %90 = vmatprep.subr.mxu0 0.0
    %91 = vmatpush2.msra.mxu0 0.0
    %92 = vmatprep.subr.mxu0 0.0
    %93 = vmatpush2.msra.mxu0 0.0
    %94 = vmatprep.subr.mxu0 0.0
    %95 = vmatpush2.msra.mxu0 0.0
    %96 = vmatprep.subr.mxu0 0.0
    %97 = vmatpush2.msra.mxu0 0.0
    %98 = vmatprep.subr.mxu0 0.0
    %99 = vmatpush2.msra.mxu0 0.0
    %100 = vmatprep.subr.mxu0 0.0
    %101 = vmatpush2.msra.mxu0 0.0
    %102 = vmatprep.subr.mxu0 0.0
    %103 = vmatpush2.msra.mxu0 0.0
    %104 = vmatprep.mubr.f32.mxu0 0.0
    %105 = vmatmul.mubr.f32.gmra.mxu0 %v38
    %v106 = vpop.f32.mrf.mxu0
    %v107 = vadd.f32 %v34, %v106
    %v108 = vpop.f32.mrf.mxu0
    %109 = vdwg.mxu0
    %v110 = vmax.f32 %v107, 0.0
    %v111 = vld [vmem:[%s3] sm:$0xff]
    %v112 = vld [vmem:[%s3 + $0x8] sm:$0xff]
    %v113 = vld [vmem:[%s3 + $0x10] sm:$0xff]
    %v114 = vld [vmem:[%s3 + $0x18] sm:$0xff]
    %v115 = vld [vmem:[%s4] sm:$0xff]
    %v116 = vld [vmem:[%s4 + $0x8] sm:$0xff]
    %v117 = vld [vmem:[%s4 + $0x10] sm:$0xff]
    %v118 = vld [vmem:[%s4 + $0x18] sm:$0xff]
    %v119 = vld [vmem:[%s4 + $0x20] sm:$0xff]
    %v120 = vld [vmem:[%s4 + $0x28] sm:$0xff]
    %v121 = vld [vmem:[%s4 + $0x30] sm:$0xff]
    %v122 = vld [vmem:[%s4 + $0x38] sm:$0xff]
    %v123 = vld [vmem:[%s4 + $0x40] sm:$0xff]
    %v124 = vld [vmem:[%s4 + $0x48] sm:$0xff]
    %v125 = vld [vmem:[%s4 + $0x50] sm:$0xff]
    %v126 = vld [vmem:[%s4 + $0x58] sm:$0xff]
    %v127 = vld [vmem:[%s4 + $0x60] sm:$0xff]
    %v128 = vld [vmem:[%s4 + $0x68] sm:$0xff]
    %v129 = vld [vmem:[%s4 + $0x70] sm:$0xff]
    %v130 = vld [vmem:[%s4 + $0x78] sm:$0xff]
    %131 = vmatprep.subr.mxu0 0.0
    %132 = vmatpush1.msra.mxu0 %v130
    %133 = vmatprep.subr.mxu0 0.0
    %134 = vmatpush1.msra.mxu0 %v129
    %135 = vmatprep.subr.mxu0 0.0
    %136 = vmatpush1.msra.mxu0 %v128
    %137 = vmatprep.subr.mxu0 0.0
    %138 = vmatpush1.msra.mxu0 %v127
    %139 = vmatprep.subr.mxu0 0.0
    %140 = vmatpush1.msra.mxu0 %v126
    %141 = vmatprep.subr.mxu0 0.0
    %142 = vmatpush1.msra.mxu0 %v125
    %143 = vmatprep.subr.mxu0 0.0
    %144 = vmatpush1.msra.mxu0 %v124
    %145 = vmatprep.subr.mxu0 0.0
    %146 = vmatpush1.msra.mxu0 %v123
    %147 = vmatprep.subr.mxu0 0.0
    %148 = vmatpush1.msra.mxu0 %v122
    %149 = vmatprep.subr.mxu0 0.0
    %150 = vmatpush1.msra.mxu0 %v121
    %151 = vmatprep.subr.mxu0 0.0
    %152 = vmatpush1.msra.mxu0 %v120
    %153 = vmatprep.subr.mxu0 0.0
    %154 = vmatpush1.msra.mxu0 %v119
    %155 = vmatprep.subr.mxu0 0.0
    %156 = vmatpush1.msra.mxu0 %v118
    %157 = vmatprep.subr.mxu0 0.0
    %158 = vmatpush1.msra.mxu0 %v117
    %159 = vmatprep.subr.mxu0 0.0
    %160 = vmatpush1.msra.mxu0 %v116
    %161 = vmatprep.subr.mxu0 0.0
    %162 = vmatpush1.msra.mxu0 %v115
    %163 = vmatprep.subr.mxu0 0.0
    %164 = vmatpush2.msra.mxu0 0.0
    %165 = vmatprep.subr.mxu0 0.0
    %166 = vmatpush2.msra.mxu0 0.0
    %167 = vmatprep.subr.mxu0 0.0
    %168 = vmatpush2.msra.mxu0 0.0
    %169 = vmatprep.subr.mxu0 0.0
    %170 = vmatpush2.msra.mxu0 0.0
    %171 = vmatprep.subr.mxu0 0.0
    %172 = vmatpush2.msra.mxu0 0.0
    %173 = vmatprep.subr.mxu0 0.0
    %174 = vmatpush2.msra.mxu0 0.0
    %175 = vmatprep.subr.mxu0 0.0
    %176 = vmatpush2.msra.mxu0 0.0
    %177 = vmatprep.subr.mxu0 0.0
    %178 = vmatpush2.msra.mxu0 0.0
    %179 = vmatprep.subr.mxu0 0.0
    %180 = vmatpush2.msra.mxu0 0.0
    %181 = vmatprep.subr.mxu0 0.0
    %182 = vmatpush2.msra.mxu0 0.0
    %183 = vmatprep.subr.mxu0 0.0
    %184 = vmatpush2.msra.mxu0 0.0
    %185 = vmatprep.subr.mxu0 0.0
    %186 = vmatpush2.msra.mxu0 0.0
    %187 = vmatprep.subr.mxu0 0.0
    %188 = vmatpush2.msra.mxu0 0.0
    %189 = vmatprep.subr.mxu0 0.0
    %190 = vmatpush2.msra.mxu0 0.0
    %191 = vmatprep.subr.mxu0 0.0
    %192 = vmatpush2.msra.mxu0 0.0
    %193 = vmatprep.subr.mxu0 0.0
    %194 = vmatpush2.msra.mxu0 0.0
    %195 = vmatprep.mubr.f32.mxu0 0.0
    %196 = vmatmul.mubr.f32.gmra.mxu0 %v110
    %v197 = vpop.f32.mrf.mxu0
    %v198 = vadd.f32 0.0, %v197
    %v199 = vpop.f32.mrf.mxu0
    %200 = vdwg.mxu0
    %201 = vmatprep.subr.mxu0 0.0
    %202 = vmatpush1.msra.mxu0 0.0
    %203 = vmatprep.subr.mxu0 0.0
    %204 = vmatpush1.msra.mxu0 0.0
    %205 = vmatprep.subr.mxu0 0.0
    %206 = vmatpush1.msra.mxu0 0.0
    %207 = vmatprep.subr.mxu0 0.0
    %208 = vmatpush1.msra.mxu0 0.0
    %209 = vmatprep.subr.mxu0 0.0
    %210 = vmatpush1.msra.mxu0 0.0
    %211 = vmatprep.subr.mxu0 0.0
    %212 = vmatpush1.msra.mxu0 0.0
    %213 = vmatprep.subr.mxu0 0.0
    %214 = vmatpush1.msra.mxu0 0.0
    %215 = vmatprep.subr.mxu0 0.0
    %216 = vmatpush1.msra.mxu0 0.0
    %217 = vmatprep.subr.mxu0 0.0
    %218 = vmatpush1.msra.mxu0 0.0
    %219 = vmatprep.subr.mxu0 0.0
    %220 = vmatpush1.msra.mxu0 0.0
    %221 = vmatprep.subr.mxu0 0.0
    %222 = vmatpush1.msra.mxu0 0.0
    %223 = vmatprep.subr.mxu0 0.0
    %224 = vmatpush1.msra.mxu0 0.0
    %225 = vmatprep.subr.mxu0 0.0
    %226 = vmatpush1.msra.mxu0 %v114
    %227 = vmatprep.subr.mxu0 0.0
    %228 = vmatpush1.msra.mxu0 %v113
    %229 = vmatprep.subr.mxu0 0.0
    %230 = vmatpush1.msra.mxu0 %v112
    %231 = vmatprep.subr.mxu0 0.0
    %232 = vmatpush1.msra.mxu0 %v111
    %233 = vmatprep.subr.mxu0 0.0
    %234 = vmatpush2.msra.mxu0 0.0
    %235 = vmatprep.subr.mxu0 0.0
    %236 = vmatpush2.msra.mxu0 0.0
    %237 = vmatprep.subr.mxu0 0.0
    %238 = vmatpush2.msra.mxu0 0.0
    %239 = vmatprep.subr.mxu0 0.0
    %240 = vmatpush2.msra.mxu0 0.0
    %241 = vmatprep.subr.mxu0 0.0
    %242 = vmatpush2.msra.mxu0 0.0
    %243 = vmatprep.subr.mxu0 0.0
    %244 = vmatpush2.msra.mxu0 0.0
    %245 = vmatprep.subr.mxu0 0.0
    %246 = vmatpush2.msra.mxu0 0.0
    %247 = vmatprep.subr.mxu0 0.0
    %248 = vmatpush2.msra.mxu0 0.0
    %249 = vmatprep.subr.mxu0 0.0
    %250 = vmatpush2.msra.mxu0 0.0
    %251 = vmatprep.subr.mxu0 0.0
    %252 = vmatpush2.msra.mxu0 0.0
    %253 = vmatprep.subr.mxu0 0.0
    %254 = vmatpush2.msra.mxu0 0.0
    %255 = vmatprep.subr.mxu0 0.0
    %256 = vmatpush2.msra.mxu0 0.0
    %257 = vmatprep.subr.mxu0 0.0
    %258 = vmatpush2.msra.mxu0 0.0
    %259 = vmatprep.subr.mxu0 0.0
    %260 = vmatpush2.msra.mxu0 0.0
    %261 = vmatprep.subr.mxu0 0.0
    %262 = vmatpush2.msra.mxu0 0.0
    %263 = vmatprep.subr.mxu0 0.0
    %264 = vmatpush2.msra.mxu0 0.0
    %265 = vmatprep.mubr.f32.mxu0 0.0
    %266 = vmatmul.mubr.f32.gmra.mxu0 %v38
    %v267 = vpop.f32.mrf.mxu0
    %v268 = vadd.f32 %v198, %v267
    %v269 = vpop.f32.mrf.mxu0
    %270 = vdwg.mxu0
    %v271 = vld [vmem:[%s5] sm:$0x1]
    %v273 = vlaneseq
    %v274 = vshrl.u32 %v273, 7
    %v275 = vsub.s32 0, %v274
    %v276 = vrot.slane %v271, %v275
    %v278 = vadd.f32 %v268, %v276
    %vm279 = vcmask 130048
    %280 = vst.msk [vmem:[#allocation2] sm:$0xff] %vm279, %v278
    // Predicated region
    $region26: #{tpu_custom_call.1} parent=1 // pred_check
      _
    $region27: #{tpu_custom_call.1} parent=1 // pred_check_branch
      %282 = sbr.rel (0) target = $region29
    $region28: #{tpu_custom_call.1} parent=1 // pred_region
      %s284 = ssub.s32 128, 128
      %285 = vsyncadd [#allocation3], %s284
      %s287 = sshll.u32 [#allocation2], 4
      %s288 = int_to_ptr.vmem [resolvable:$true] %s287
      %290 = dma.vmem_to_hbm [thread:$0]  %s288, 128, %s6, [#allocation3]
    $region29: #{tpu_custom_call.1} parent=1 // pred_fallthru
      _
    // Predicated region
    $region30: #{tpu_custom_call.1} parent=1 // pred_check
      _
    $region31: #{tpu_custom_call.1} parent=1 // pred_check_branch
      %292 = sbr.rel (0) target = $region33
    $region32: #{tpu_custom_call.1} parent=1 // pred_region
      %293 = dma.done [#allocation3], 128
    $region33: #{tpu_custom_call.1} parent=1 // pred_fallthru
      _
    %294 = vsyncpa [#allocation3], 1

</llo_original>
